<compile_context>
chip_gen: v5e
topology: v5e:2x2
jax: 0.10.0
libtpu: 0.0.40
codegen_flags: <defaults>
</compile_context>

<pallas_src>
import numpy as np
import jax
import jax.numpy as jnp
from jax.experimental import pallas as pl
from jax.experimental.pallas import tpu as pltpu


def _round_up(x: int, m: int) -> int:
    return (x + m - 1) // m * m


# ----------------------------------------------------------------------------
# Per-generation hardware parameters.
# ----------------------------------------------------------------------------
def _tpu_hw_params():
    """Returns (mxu_align, vmem_capacity_bytes) for the local TPU generation."""
    kind = ""
    try:
        kind = jax.devices()[0].device_kind.lower()
    except Exception:
        pass
    old_gen = any(t in kind for t in ("v2", "v3", "v4", "v5"))
    mxu_align = 128 if old_gen else 256            # v5e-: 128x128 MXU, v6e/v7x: 256x256
    vmem_cap = (128 << 20) if (kind and "7" not in kind) else (64 << 20)
    try:                                           # authoritative if available
        vmem_cap = int(pltpu.get_tpu_info().vmem_capacity_bytes)
    except Exception:
        pass
    return mxu_align, vmem_cap


# ----------------------------------------------------------------------------
# Host-side construction of the pooling (A) and bilinear-upsample (B) factors.
# Entries (1/W and multiples of 1/(2*stride)) are exactly representable in bf16.
# ----------------------------------------------------------------------------
def _build_pool_interp_factors(nt: int, window_size: int, pool_align: int):
    W = window_size
    stride = max(1, W // 4)
    pad = W // 2
    n_pool = (nt + 2 * pad - W) // stride + 1
    n_pool_pad = _round_up(n_pool, pool_align)

    # A: avg_pool with kernel (1,W), stride, padding, count_include_pad=True.
    t = np.arange(nt)[:, None]
    p = np.arange(n_pool)[None, :]
    start = p * stride - pad
    A = ((t >= start) & (t < start + W)).astype(np.float64) / float(W)     # (nt, n_pool)

    # B: bilinear interpolation along time, scale=stride, align_corners=False.
    n_out = n_pool * stride
    j = np.arange(n_out)
    src = np.maximum((j + 0.5) / stride - 0.5, 0.0)
    i0 = np.minimum(np.floor(src).astype(np.int64), n_pool - 1)
    i1 = np.minimum(i0 + 1, n_pool - 1)
    lam1 = src - i0
    lam0 = 1.0 - lam1
    B = np.zeros((n_pool, n_out), dtype=np.float64)
    B[i0, j] += lam0
    B[i1, j] += lam1
    B = B[:, :nt]                                                          # (n_pool, nt)

    # Zero-pad the pooled axis to the MXU-native width (padding contributes 0).
    A_pad = np.zeros((nt, n_pool_pad), dtype=np.float32)
    A_pad[:, :n_pool] = A
    B_pad = np.zeros((n_pool_pad, nt), dtype=np.float32)
    B_pad[:n_pool, :] = B
    return A_pad, B_pad


# ----------------------------------------------------------------------------
# Kernels.  bf16 MXU inputs with f32 accumulation; elementwise chain in f32.
# ----------------------------------------------------------------------------
def _tmn_kernel_factored(x_ref, a_ref, b_ref, o_ref):
    xin = x_ref[...]                                   # (row_tile, nt)
    x32 = xin.astype(jnp.float32)
    a = a_ref[...]                                     # (nt, n_pool_pad)   bf16
    b = b_ref[...]                                     # (n_pool_pad, nt)   bf16

    pooled = jnp.dot(xin.astype(jnp.bfloat16), a, preferred_element_type=jnp.float32)
    mean = jnp.dot(pooled.astype(jnp.bfloat16), b, preferred_element_type=jnp.float32)
    c = x32 - mean                                     # data -= moving_mean

    pooled_abs = jnp.dot(jnp.abs(c).astype(jnp.bfloat16), a,
                         preferred_element_type=jnp.float32)
    amean = jnp.dot(pooled_abs.astype(jnp.bfloat16), b,
                    preferred_element_type=jnp.float32)
    # zero-guard (eps instead of exact ==0; see notes)
    amean = jnp.where(amean < 1e-12, jnp.float32(1.0), amean)
    o_ref[...] = (c * pl.reciprocal(amean, approx=True)).astype(o_ref.dtype)


def _tmn_kernel_dense(x_ref, m_ref, o_ref):
    xin = x_ref[...]                                   # (row_tile, nt)
    x32 = xin.astype(jnp.float32)
    m = m_ref[...]                                     # (nt, nt)  bf16 (exact)

    mean = jnp.dot(xin.astype(jnp.bfloat16), m, preferred_element_type=jnp.float32)
    c = x32 - mean
    amean = jnp.dot(jnp.abs(c).astype(jnp.bfloat16), m, preferred_element_type=jnp.float32)
    amean = jnp.where(amean < 1e-12, jnp.float32(1.0), amean)
    o_ref[...] = (c * pl.reciprocal(amean, approx=True)).astype(o_ref.dtype)


# ----------------------------------------------------------------------------
# Wrapper: shape/dtype handling, tiling/VMEM budgeting, pallas_call.
# ----------------------------------------------------------------------------
def temporal_moving_normalization(data, window_size: int = 64):
    data = jnp.asarray(data)
    if data.dtype not in (jnp.float32, jnp.bfloat16):
        data = data.astype(jnp.float32)
    io_dtype = data.dtype

    if data.ndim == 2:
        d4 = data[None, None]
    elif data.ndim == 3:
        d4 = data[None]
    else:
        d4 = data
    nb, nc, nx, nt = d4.shape
    R = nb * nc * nx

    mxu_align, vmem_cap = _tpu_hw_params()
    A_np, B_np = _build_pool_interp_factors(nt, window_size, mxu_align)
    n_pool_pad = A_np.shape[1]
    # Factoring only pays off once the pooled axis is meaningfully narrower than nt.
    use_dense = (2 * n_pool_pad >= nt)

    # ---- explicit VMEM budget -> row_tile and vmem_limit_bytes ----
    in_bytes = np.dtype(io_dtype).itemsize
    if use_dense:
        const_bytes = nt * nt * 2                              # M (bf16)
        f32_tmp_per_row = 4 * nt * 4                           # mean, c, amean, x32
    else:
        const_bytes = 2 * nt * n_pool_pad * 2                  # A + B (bf16)
        f32_tmp_per_row = 4 * nt * 4 + 2 * n_pool_pad * 4      # + pooled / pooled_abs
    single_buffer_consts = const_bytes >= (4 << 20)            # only matters at large nt
    const_mult = 1 if single_buffer_consts else 2
    per_row_bytes = 4 * nt * in_bytes + f32_tmp_per_row        # 2x in + 2x out buffers + temps

    budget = int(vmem_cap * 0.7)                               # headroom for compiler scratch
    avail = budget - const_mult * const_bytes
    row_budget = max(8, avail // per_row_bytes) if avail > 0 else 8
    target = max(256, (2 << 20) // max(1, nt * in_bytes))      # aim for ~2 MiB input tiles
    row_tile = int(min(target, row_budget))

    if R < 16:
        row_tile = R                                           # full-extent block is legal
    else:
        # >= 2 grid steps so v7x can split the parallel axis across both TCs.
        row_tile = min(row_tile, _round_up((R + 1) // 2, 8))
        if row_tile >= 256:
            row_tile = row_tile // 256 * 256                   # MXU-aligned tiles
        elif row_tile >= 128:
            row_tile = 128
        else:
            row_tile = max(8, row_tile // 8 * 8)

    grid = (pl.cdiv(R, row_tile),)                             # ragged last block is masked
    vmem_needed = const_mult * const_bytes + row_tile * per_row_bytes
    vmem_limit = int(min(vmem_cap, max(vmem_needed + (4 << 20), 32 << 20)))

    x2 = d4.reshape(R, nt)                                     # no host-side padding copy

    def _const_spec(shape):
        # Constant operands: block index never changes -> DMA'd once, resident.
        if single_buffer_consts:
            return pl.BlockSpec(shape, lambda i: (0, 0), pipeline_mode=pl.Buffered(1))
        return pl.BlockSpec(shape, lambda i: (0, 0))

    x_spec = pl.BlockSpec((row_tile, nt), lambda i: (i, 0))
    out_spec = pl.BlockSpec((row_tile, nt), lambda i: (i, 0))

    if use_dense:
        M_b = jnp.asarray(A_np.astype(np.float64) @ B_np.astype(np.float64),
                          dtype=jnp.bfloat16)
        kernel = _tmn_kernel_dense
        in_specs = [x_spec, _const_spec((nt, nt))]
        operands = (x2, M_b)
    else:
        A_b = jnp.asarray(A_np, dtype=jnp.bfloat16)
        B_b = jnp.asarray(B_np, dtype=jnp.bfloat16)
        kernel = _tmn_kernel_factored
        in_specs = [x_spec, _const_spec((nt, n_pool_pad)), _const_spec((n_pool_pad, nt))]
        operands = (x2, A_b, B_b)

    out2 = pl.pallas_call(
        kernel,
        out_shape=jax.ShapeDtypeStruct((R, nt), io_dtype),
        grid_spec=pltpu.PrefetchScalarGridSpec(
            num_scalar_prefetch=0,
            grid=grid,
            in_specs=in_specs,
            out_specs=out_spec,
        ),
        compiler_params=pltpu.CompilerParams(
            dimension_semantics=("parallel",),
            vmem_limit_bytes=vmem_limit),
    )(*operands)

    out = out2.reshape(nb, nc, nx, nt)
    # PyTorch: data.squeeze(0) removes only a leading singleton batch dim.
    if out.shape[0] == 1:
        out = out[0]
    return out


# ----------------------------------------------------------------------------
# Pure-numpy reference mirroring the PyTorch ops (for validation).
# ----------------------------------------------------------------------------
def _ref_numpy(data, window_size):
    d = np.asarray(data, dtype=np.float64)
    if d.ndim == 2:
        d = d[None, None]
    elif d.ndim == 3:
        d = d[None]
    nb, nc, nx, nt = d.shape
    W = window_size
    stride = W // 4
    pad = W // 2
    n_pool = (nt + 2 * pad - W) // stride + 1

    def avg_pool_t(x):
        xp = np.pad(x, [(0, 0)] * (x.ndim - 1) + [(pad, pad)])
        return np.stack(
            [xp[..., p * stride:p * stride + W].sum(axis=-1) / W for p in range(n_pool)],
            axis=-1)

    def interp_t(x):
        n_in = x.shape[-1]
        n_out = n_in * stride
        j = np.arange(n_out)
        src = np.maximum((j + 0.5) / stride - 0.5, 0.0)
        i0 = np.minimum(np.floor(src).astype(np.int64), n_in - 1)
        i1 = np.minimum(i0 + 1, n_in - 1)
        lam1 = src - i0
        lam0 = 1.0 - lam1
        return (x[..., i0] * lam0 + x[..., i1] * lam1)[..., :nt]

    mm = interp_t(avg_pool_t(d))
    d = d - mm
    ma = interp_t(avg_pool_t(np.abs(d)))
    ma[ma == 0.0] = 1.0
    d = d / ma
    if d.shape[0] == 1:
        d = d[0]
    return d


if __name__ == "__main__":
    window_size = 64
    k1, k2 = jax.random.split(jax.random.PRNGKey(0))

    # Small-nt path (dense M), row count divisible by the tile.
    data = jax.random.normal(k1, (2, 4, 16, 256), dtype=jnp.float32)
    out = jax.block_until_ready(temporal_moving_normalization(data, window_size))
    ref = _ref_numpy(np.asarray(data), window_size)
    assert out.shape == ref.shape, (out.shape, ref.shape)
    assert np.all(np.isfinite(np.asarray(out)))
    np.testing.assert_allclose(np.asarray(out, dtype=np.float64), ref,
                               rtol=2e-2, atol=1e-2)

    # Large-nt path (factored A/B) with a ragged row count — exercises the
    # masked last block that replaced the host-side padding copy.
    data2 = jax.random.normal(k2, (1, 3, 20, 1024), dtype=jnp.float32)
    out2 = jax.block_until_ready(temporal_moving_normalization(data2, window_size))
    ref2 = _ref_numpy(np.asarray(data2), window_size)
    assert out2.shape == ref2.shape, (out2.shape, ref2.shape)
    assert np.all(np.isfinite(np.asarray(out2)))
    np.testing.assert_allclose(np.asarray(out2, dtype=np.float64), ref2,
                               rtol=2e-2, atol=1e-2)

    print("KERNEL_OK")
</pallas_src>

<mosaic_0001>
module attributes {stable_mosaic.version = 11 : i64} {
  func.func @_tmn_kernel_dense(%arg0: i32, %arg1: memref<64x256xf32, #tpu.memory_space<vmem>>, %arg2: memref<256x256xbf16, #tpu.memory_space<vmem>>, %arg3: memref<64x256xf32, #tpu.memory_space<vmem>>) attributes {dimension_semantics = [#tpu.dimension_semantics<parallel>], iteration_bounds = array<i64: 2>, scalar_prefetch = 0 : i64, scratch_operands = 0 : i64, tpu.core_type = #tpu.core_type<tc>, window_params = [{transform_indices = @transform_0, window_bounds = array<i64: 64, 256>}, {pipeline_mode = #tpu.pipeline_mode<synchronous>, transform_indices = @transform_1, window_bounds = array<i64: 256, 256>}, {transform_indices = @transform_2, window_bounds = array<i64: 64, 256>}]} {
    %c0 = arith.constant 0 : index
    %c0_0 = arith.constant 0 : index
    %0 = vector.load %arg1[%c0, %c0_0] : memref<64x256xf32, #tpu.memory_space<vmem>>, vector<64x256xf32>
    %c0_1 = arith.constant 0 : index
    %c0_2 = arith.constant 0 : index
    %1 = vector.load %arg2[%c0_1, %c0_2] : memref<256x256xbf16, #tpu.memory_space<vmem>>, vector<256x256xbf16>
    %2 = arith.truncf %0 : vector<64x256xf32> to vector<64x256xbf16>
    %cst = arith.constant dense<0.000000e+00> : vector<64x256xf32>
    %3 = tpu.matmul %2, %1, %cst {dimension_numbers = #tpu.dot_dimension_numbers<[1], [0], [0], [1], [0, 0, 1, 1], [], []>} : vector<64x256xbf16>, vector<256x256xbf16>, vector<64x256xf32> -> vector<64x256xf32>
    %4 = arith.subf %0, %3 : vector<64x256xf32>
    %5 = math.absf %4 : vector<64x256xf32>
    %6 = arith.truncf %5 : vector<64x256xf32> to vector<64x256xbf16>
    %cst_3 = arith.constant dense<0.000000e+00> : vector<64x256xf32>
    %7 = tpu.matmul %6, %1, %cst_3 {dimension_numbers = #tpu.dot_dimension_numbers<[1], [0], [0], [1], [0, 0, 1, 1], [], []>} : vector<64x256xbf16>, vector<256x256xbf16>, vector<64x256xf32> -> vector<64x256xf32>
    %cst_4 = arith.constant 9.99999996E-13 : f32
    %8 = vector.broadcast %cst_4 : f32 to vector<64x256xf32>
    %9 = arith.cmpf olt, %7, %8 : vector<64x256xf32>
    %cst_5 = arith.constant 1.000000e+00 : f32
    %10 = vector.broadcast %cst_5 : f32 to vector<64x256xf32>
    %11 = arith.select %9, %10, %7 : vector<64x256xi1>, vector<64x256xf32>
    %12 = tpu.reciprocal %11 {approx = true} : vector<64x256xf32> -> vector<64x256xf32>
    %13 = arith.mulf %4, %12 : vector<64x256xf32>
    %c0_6 = arith.constant 0 : index
    %c0_7 = arith.constant 0 : index
    %14 = vector.load %arg3[%c0_6, %c0_7] : memref<64x256xf32, #tpu.memory_space<vmem>>, vector<64x256xf32>
    tpu.vector_store %arg3[%c0_6, %c0_7], %13 {strides = array<i32>} : memref<64x256xf32, #tpu.memory_space<vmem>>, vector<64x256xf32>,
    return
  }
  func.func @transform_0(%arg0: i32) -> (i32, i32) {
    %c0_i32 = arith.constant 0 : i32
    %c0_i32_0 = arith.constant 0 : i32
    return %arg0, %c0_i32 : i32, i32
  }
  func.func @transform_1(%arg0: i32) -> (i32, i32) {
    %c0_i32 = arith.constant 0 : i32
    %c0_i32_0 = arith.constant 0 : i32
    %c0_i32_1 = arith.constant 0 : i32
    return %c0_i32, %c0_i32_0 : i32, i32
  }
  func.func @transform_2(%arg0: i32) -> (i32, i32) {
    %c0_i32 = arith.constant 0 : i32
    %c0_i32_0 = arith.constant 0 : i32
    return %arg0, %c0_i32 : i32, i32
  }
}

</mosaic_0001>

<llo_original>
// kernel: tpu_custom_call.1
$region0: #{tpu_custom_call.1}
  #allocation0 [shape = 'u32[]', space=smem, size = 0x4, offset = 0x4, fixed_abs, tag = 'smem constant byte address 0x4 - core index']
  #allocation1 [shape = 'u32[72,128]{1,0:T(1,128)}', space=vmem, size = 0x9000, scoped, tag = 'internal scratch']
  %s0 = inlined_call_operand.hbm [shape: f32[128,256], index: 0, kind: input, shape index: {}]
  %s1 = inlined_call_operand.hbm [shape: bf16[256,256], index: 1, kind: input, shape index: {}]
  %s2 = inlined_call_operand.hbm [shape: f32[128,256], index: 2, kind: output, shape index: {}]
  %s3 = sld [smem:[#allocation0]]
  $region49: #{tpu_custom_call.1} parent=0
    _
  %s5 = ssub.s32 1, %s3
  %s6 = scalar_select 0, %s5, %s3
  $region1: #{tpu_custom_call.1} parent=0
    #allocation2 [shape = 'u8[131072]{0}', space=vmem, size = 0x20000, scoped, tag = 'input window, operand 0']
    #allocation3 [shape = 's32[2]{0}', space=sflag, size = 0x8, scoped, tag = 'scoped memory for tpu_custom_call.1']
    #allocation4 [shape = 's32[2]{0}', space=sflag, size = 0x8, scoped, tag = 'scoped memory for tpu_custom_call.1']
    #allocation5 [shape = 'u8[131072]{0}', space=vmem, size = 0x20000, scoped, tag = 'input window, operand 1, single buffered']
    #allocation6 [shape = 's32[1]{0}', space=sflag, size = 0x4, scoped, tag = 'scoped memory for tpu_custom_call.1']
    #allocation7 [shape = 'u8[131072]{0}', space=vmem, size = 0x20000, scoped, tag = 'output window, operand 0']
    %7 = vsyncpa [#allocation3], 0
    %s8 = scalar_lea.sflag [#allocation3], 1
    %9 = vsyncpa %s8, 0
    %10 = vsyncpa [#allocation6], 0
    %11 = vsyncpa [#allocation4], 0
    %s12 = scalar_lea.sflag [#allocation4], 1
    %13 = vsyncpa %s12, 0
    loop: start=0, step=1, limit=4
    $region2: #{tpu_custom_call.1} parent=1 // loop_pre_header
      _
    $region3: #{tpu_custom_call.1} parent=1 // loop_header
      %s15 = sphi 0, %s19
      %p16 = scmp.ge.s32.totalorder %s15, 4
      %s25 = sphi 0, %s27
      %s28 = sphi 0, %s25
      %s29 = sphi 0, %s28
      %s45 = sphi 0, %s29
      %s49 = sphi 0, %s49
      %s51 = sphi 0, %s49
      %s52 = sphi 0, %s51
      %s66 = sphi 0, %s52
      %s72 = sphi 0, %s74
      %s75 = sphi 0, %s72
      %s76 = sphi 0, %s75
      %s92 = sphi 0, %s76
    $region4: #{tpu_custom_call.1} parent=1 // loop_header_branch
      %18 = sbr.rel (%p16) target = $region8
    $region5: #{tpu_custom_call.1} parent=1 // loop_body
      %s20 = ssub.s32 %s15, 1
      %s21 = ssub.s32 %s15, 2
      %s22 = sadd.s32 %s15, 1
      %s23 = ssub.s32 %s15, %s22
      %p24 = scmp.eq.s32.totalorder %s23, 0
      %s26 = sadd.s32 %s25, 1
      %s27 = scalar_select %p24, %s25, %s26
      %p30 = pneg %p24
      %p31 = scmp.eq.s32.totalorder %s15, 1
      %p32 = por %p30, %p31
      %p33 = scmp.ne.s32.totalorder %s25, %s28
      %p34 = scmp.eq.s32.totalorder %s15, 0
      %p35 = por %p33, %p34
      %p36 = scmp.ne.s32.totalorder %s25, %s28
      %p37 = scmp.eq.s32.totalorder %s20, 1
      %p38 = por %p36, %p37
      %p39 = scmp.ne.s32.totalorder %s28, %s29
      %p40 = scmp.eq.s32.totalorder %s20, 0
      %p41 = por %p39, %p40
      %p42 = scmp.ne.s32.totalorder %s28, %s29
      %p43 = scmp.eq.s32.totalorder %s21, 1
      %p44 = por %p42, %p43
      %p46 = scmp.ne.s32.totalorder %s29, %s45
      %p47 = scmp.eq.s32.totalorder %s21, 0
      %p48 = por %p46, %p47
      %s50 = sadd.s32 %s49, 1
      %p53 = scmp.eq.s32.totalorder %s15, 1
      %p54 = scmp.ne.s32.totalorder %s49, %s51
      %p55 = scmp.eq.s32.totalorder %s15, 0
      %p56 = por %p54, %p55
      %p57 = scmp.ne.s32.totalorder %s49, %s51
      %p58 = scmp.eq.s32.totalorder %s20, 1
      %p59 = por %p57, %p58
      %p60 = scmp.ne.s32.totalorder %s51, %s52
      %p61 = scmp.eq.s32.totalorder %s20, 0
      %p62 = por %p60, %p61
      %p63 = scmp.ne.s32.totalorder %s51, %s52
      %p64 = scmp.eq.s32.totalorder %s21, 1
      %p65 = por %p63, %p64
      %p67 = scmp.ne.s32.totalorder %s52, %s66
      %p68 = scmp.eq.s32.totalorder %s21, 0
      %p69 = por %p67, %p68
      %s70 = ssub.s32 %s15, %s22
      %p71 = scmp.eq.s32.totalorder %s70, 0
      %s73 = sadd.s32 %s72, 1
      %s74 = scalar_select %p71, %s72, %s73
      %p77 = pneg %p71
      %p78 = scmp.eq.s32.totalorder %s15, 1
      %p79 = por %p77, %p78
      %p80 = scmp.ne.s32.totalorder %s72, %s75
      %p81 = scmp.eq.s32.totalorder %s15, 0
      %p82 = por %p80, %p81
      %p83 = scmp.ne.s32.totalorder %s72, %s75
      %p84 = scmp.eq.s32.totalorder %s20, 1
      %p85 = por %p83, %p84
      %p86 = scmp.ne.s32.totalorder %s75, %s76
      %p87 = scmp.eq.s32.totalorder %s20, 0
      %p88 = por %p86, %p87
      %p89 = scmp.ne.s32.totalorder %s75, %s76
      %p90 = scmp.eq.s32.totalorder %s21, 1
      %p91 = por %p89, %p90
      %p93 = scmp.ne.s32.totalorder %s76, %s92
      %p94 = scmp.eq.s32.totalorder %s21, 0
      %p95 = por %p93, %p94
      %p96 = scmp.le.s32.totalorder 1, %s15
      %p97 = scmp.lt.s32.totalorder %s15, 3
      %p98 = pnand %p96, %p97
      %p99 = pneg %p98
      // Predicated region
      $region9: #{tpu_custom_call.1} parent=5 // pred_check
        _
      $region10: #{tpu_custom_call.1} parent=5 // pred_check_branch
        %101 = sbr.rel (%p98) target = $region12
      $region11: #{tpu_custom_call.1} parent=5 // pred_region
        %s102 = ssub.s32 %s15, 1
        // Predicated region
        $region13: #{tpu_custom_call.1} parent=11 // pred_check
          %p103 = pneg %p62
        $region14: #{tpu_custom_call.1} parent=11 // pred_check_branch
          %105 = sbr.rel (%p103) target = $region16
        $region15: #{tpu_custom_call.1} parent=11 // pred_region
          %107 = vsyncadd [#allocation6], 0
          %s108 = sshll.u32 %s1, 4
          %s109 = int_to_ptr.hbm [resolvable:$true] %s108
          %s110 = sshll.u32 [#allocation5], 4
          %s111 = int_to_ptr.vmem [resolvable:$true] %s110
          %116 = dma.hbm_to_vmem [thread:$0]  %s109, 4096, %s111, [#allocation6], 128, 128, 8
        $region16: #{tpu_custom_call.1} parent=11 // pred_fallthru
          _
      $region12: #{tpu_custom_call.1} parent=5 // pred_fallthru
        _
      %p117 = scmp.lt.s32.totalorder %s15, 2
      // Predicated region
      $region17: #{tpu_custom_call.1} parent=5 // pred_check
        %p118 = pneg %p117
      $region18: #{tpu_custom_call.1} parent=5 // pred_check_branch
        %120 = sbr.rel (%p118) target = $region20
      $region19: #{tpu_custom_call.1} parent=5 // pred_region
        // Predicated region
        $region21: #{tpu_custom_call.1} parent=19 // pred_check
          %p121 = pneg %p35
        $region22: #{tpu_custom_call.1} parent=19 // pred_check_branch
          %123 = sbr.rel (%p121) target = $region24
        $region23: #{tpu_custom_call.1} parent=19 // pred_region
          %s124 = sand.u32 %s25, 1
          %s125 = scalar_lea.sflag [#allocation3], %s124
          %s126 = sand.u32 %s25, 1
          %s127 = smul.addr %s126, 128
          %s128 = scalar_lea.vmem [#allocation2], %s127
          %s129 = smul.u32 8, %s15
          %131 = vsyncadd %s125, 0
          %s132 = smul.addr %s129, 2
          %s133 = smul.addr %s132, 8
          %s134 = scalar_lea.hbm %s0, %s133
          %s135 = sshll.u32 %s134, 4
          %s136 = int_to_ptr.hbm [resolvable:$true] %s135
          %s137 = sshll.u32 %s128, 4
          %s138 = int_to_ptr.vmem [resolvable:$true] %s137
          %143 = dma.hbm_to_vmem [thread:$0]  %s136, 2048, %s138, %s125, 256, 256, 16
        $region24: #{tpu_custom_call.1} parent=19 // pred_fallthru
          _
      $region20: #{tpu_custom_call.1} parent=5 // pred_fallthru
        _
      %p144 = scmp.le.s32.totalorder 1, %s15
      %p145 = scmp.lt.s32.totalorder %s15, 3
      %p146 = pnand %p144, %p145
      %p147 = pneg %p146
      // Predicated region
      $region25: #{tpu_custom_call.1} parent=5 // pred_check
        _
      $region26: #{tpu_custom_call.1} parent=5 // pred_check_branch
        %149 = sbr.rel (%p146) target = $region28
      $region27: #{tpu_custom_call.1} parent=5 // pred_region
        %s150 = ssub.s32 %s15, 1
        %s151 = sand.u32 %s28, 1
        %s152 = scalar_lea.sflag [#allocation3], %s151
        %s153 = sand.u32 %s28, 1
        %s154 = smul.addr %s153, 128
        %s155 = scalar_lea.vmem [#allocation2], %s154
        // Predicated region
        $region29: #{tpu_custom_call.1} parent=27 // pred_check
          %p156 = pneg %p41
        $region30: #{tpu_custom_call.1} parent=27 // pred_check_branch
          %158 = sbr.rel (%p156) target = $region32
        $region31: #{tpu_custom_call.1} parent=27 // pred_region
          %160 = dma.done %s152, 2048
        $region32: #{tpu_custom_call.1} parent=27 // pred_fallthru
          _
        // Predicated region
        $region33: #{tpu_custom_call.1} parent=27 // pred_check
          %p161 = pneg %p62
        $region34: #{tpu_custom_call.1} parent=27 // pred_check_branch
          %163 = sbr.rel (%p161) target = $region36
        $region35: #{tpu_custom_call.1} parent=27 // pred_region
          %165 = dma.done [#allocation6], 4096
        $region36: #{tpu_custom_call.1} parent=27 // pred_fallthru
          _
        %s166 = sand.u32 %s28, 1
        %s167 = scalar_lea.sflag [#allocation3], %s166
        %s168 = sand.u32 %s28, 1
        %s169 = smul.addr %s168, 128
        %s170 = scalar_lea.vmem [#allocation2], %s169
        %p171 = pneg %p41
        %p172 = pneg %p38
        %p173 = pneg %p62
        %p174 = pneg %p59
        %p175 = pneg %p88
        %p176 = pneg %p85
        %s177 = sand.u32 %s75, 1
        %s178 = scalar_lea.sflag [#allocation4], %s177
        %s179 = sand.u32 %s75, 1
        %s180 = smul.addr %s179, 128
        %s181 = scalar_lea.vmem [#allocation7], %s180
        %s182 = smul.u32 8, %s20
        %s183 = smul.u32 8, %s20
        %v184 = vld [vmem:[%s155] sm:$0xff]
        %v185 = vld [vmem:[%s155 + $0x8] sm:$0xff]
        %v186 = vld [vmem:[%s155 + $0x10] sm:$0xff]
        %v187 = vld [vmem:[%s155 + $0x18] sm:$0xff]
        %v188 = vld [vmem:[%s155 + $0x20] sm:$0xff]
        %v189 = vld [vmem:[%s155 + $0x28] sm:$0xff]
        %v190 = vld [vmem:[%s155 + $0x30] sm:$0xff]
        %v191 = vld [vmem:[%s155 + $0x38] sm:$0xff]
        %v192 = vld [vmem:[%s155 + $0x40] sm:$0xff]
        %v193 = vld [vmem:[%s155 + $0x48] sm:$0xff]
        %v194 = vld [vmem:[%s155 + $0x50] sm:$0xff]
        %v195 = vld [vmem:[%s155 + $0x58] sm:$0xff]
        %v196 = vld [vmem:[%s155 + $0x60] sm:$0xff]
        %v197 = vld [vmem:[%s155 + $0x68] sm:$0xff]
        %v198 = vld [vmem:[%s155 + $0x70] sm:$0xff]
        %v199 = vld [vmem:[%s155 + $0x78] sm:$0xff]
        %v200 = vld [vmem:[#allocation5] sm:$0xff]
        %v201 = vld [vmem:[#allocation5 + $0x8] sm:$0xff]
        %v202 = vld [vmem:[#allocation5 + $0x10] sm:$0xff]
        %v203 = vld [vmem:[#allocation5 + $0x18] sm:$0xff]
        %v204 = vld [vmem:[#allocation5 + $0x20] sm:$0xff]
        %v205 = vld [vmem:[#allocation5 + $0x28] sm:$0xff]
        %v206 = vld [vmem:[#allocation5 + $0x30] sm:$0xff]
        %v207 = vld [vmem:[#allocation5 + $0x38] sm:$0xff]
        %v208 = vld [vmem:[#allocation5 + $0x40] sm:$0xff]
        %v209 = vld [vmem:[#allocation5 + $0x48] sm:$0xff]
        %v210 = vld [vmem:[#allocation5 + $0x50] sm:$0xff]
        %v211 = vld [vmem:[#allocation5 + $0x58] sm:$0xff]
        %v212 = vld [vmem:[#allocation5 + $0x60] sm:$0xff]
        %v213 = vld [vmem:[#allocation5 + $0x68] sm:$0xff]
        %v214 = vld [vmem:[#allocation5 + $0x70] sm:$0xff]
        %v215 = vld [vmem:[#allocation5 + $0x78] sm:$0xff]
        %v216 = vld [vmem:[#allocation5 + $0x80] sm:$0xff]
        %v217 = vld [vmem:[#allocation5 + $0x88] sm:$0xff]
        %v218 = vld [vmem:[#allocation5 + $0x90] sm:$0xff]
        %v219 = vld [vmem:[#allocation5 + $0x98] sm:$0xff]
        %v220 = vld [vmem:[#allocation5 + $0xa0] sm:$0xff]
        %v221 = vld [vmem:[#allocation5 + $0xa8] sm:$0xff]
        %v222 = vld [vmem:[#allocation5 + $0xb0] sm:$0xff]
        %v223 = vld [vmem:[#allocation5 + $0xb8] sm:$0xff]
        %v224 = vld [vmem:[#allocation5 + $0xc0] sm:$0xff]
        %v225 = vld [vmem:[#allocation5 + $0xc8] sm:$0xff]
        %v226 = vld [vmem:[#allocation5 + $0xd0] sm:$0xff]
        %v227 = vld [vmem:[#allocation5 + $0xd8] sm:$0xff]
        %v228 = vld [vmem:[#allocation5 + $0xe0] sm:$0xff]
        %v229 = vld [vmem:[#allocation5 + $0xe8] sm:$0xff]
        %v230 = vld [vmem:[#allocation5 + $0xf0] sm:$0xff]
        %v231 = vld [vmem:[#allocation5 + $0xf8] sm:$0xff]
        %v232 = vpack.c.bf16 %v186, %v184
        %v233 = vpack.c.bf16 %v187, %v185
        %v234 = vpack.c.bf16 %v190, %v188
        %v235 = vpack.c.bf16 %v191, %v189
        %v236 = vpack.c.bf16 %v194, %v192
        %v237 = vpack.c.bf16 %v195, %v193
        %v238 = vpack.c.bf16 %v198, %v196
        %v239 = vpack.c.bf16 %v199, %v197
        %v272 = vunpack.c.l.b16 %v200
        %v273 = vunpack.c.h.b16 %v200
        %v274 = vunpack.c.l.b16 %v201
        %v275 = vunpack.c.h.b16 %v201
        %v276 = vunpack.c.l.b16 %v202
        %v277 = vunpack.c.h.b16 %v202
        %v278 = vunpack.c.l.b16 %v203
        %v279 = vunpack.c.h.b16 %v203
        %v280 = vunpack.c.l.b16 %v204
        %v281 = vunpack.c.h.b16 %v204
        %v282 = vunpack.c.l.b16 %v205
        %v283 = vunpack.c.h.b16 %v205
        %v284 = vunpack.c.l.b16 %v206
        %v285 = vunpack.c.h.b16 %v206
        %v286 = vunpack.c.l.b16 %v207
        %v287 = vunpack.c.h.b16 %v207
        %v288 = vunpack.c.l.b16 %v208
        %v289 = vunpack.c.h.b16 %v208
        %v290 = vunpack.c.l.b16 %v209
        %v291 = vunpack.c.h.b16 %v209
        %v292 = vunpack.c.l.b16 %v210
        %v293 = vunpack.c.h.b16 %v210
        %v294 = vunpack.c.l.b16 %v211
        %v295 = vunpack.c.h.b16 %v211
        %v296 = vunpack.c.l.b16 %v212
        %v297 = vunpack.c.h.b16 %v212
        %v298 = vunpack.c.l.b16 %v213
        %v299 = vunpack.c.h.b16 %v213
        %v300 = vunpack.c.l.b16 %v214
        %v301 = vunpack.c.h.b16 %v214
        %v302 = vunpack.c.l.b16 %v215
        %v303 = vunpack.c.h.b16 %v215
        %v304 = vunpack.c.l.b16 %v216
        %v305 = vunpack.c.h.b16 %v216
        %v306 = vunpack.c.l.b16 %v217
        %v307 = vunpack.c.h.b16 %v217
        %v308 = vunpack.c.l.b16 %v218
        %v309 = vunpack.c.h.b16 %v218
        %v310 = vunpack.c.l.b16 %v219
        %v311 = vunpack.c.h.b16 %v219
        %v312 = vunpack.c.l.b16 %v220
        %v313 = vunpack.c.h.b16 %v220
        %v314 = vunpack.c.l.b16 %v221
        %v315 = vunpack.c.h.b16 %v221
        %v316 = vunpack.c.l.b16 %v222
        %v317 = vunpack.c.h.b16 %v222
        %v318 = vunpack.c.l.b16 %v223
        %v319 = vunpack.c.h.b16 %v223
        %v320 = vunpack.c.l.b16 %v224
        %v321 = vunpack.c.h.b16 %v224
        %v322 = vunpack.c.l.b16 %v225
        %v323 = vunpack.c.h.b16 %v225
        %v324 = vunpack.c.l.b16 %v226
        %v325 = vunpack.c.h.b16 %v226
        %v326 = vunpack.c.l.b16 %v227
        %v327 = vunpack.c.h.b16 %v227
        %v328 = vunpack.c.l.b16 %v228
        %v329 = vunpack.c.h.b16 %v228
        %v330 = vunpack.c.l.b16 %v229
        %v331 = vunpack.c.h.b16 %v229
        %v332 = vunpack.c.l.b16 %v230
        %v333 = vunpack.c.h.b16 %v230
        %v334 = vunpack.c.l.b16 %v231
        %v335 = vunpack.c.h.b16 %v231
        %v336 = vpack.c.b16 %v274, %v272
        %v337 = vpack.c.b16 %v275, %v273
        %v338 = vpack.c.b16 %v278, %v276
        %v339 = vpack.c.b16 %v279, %v277
        %v340 = vpack.c.b16 %v282, %v280
        %v341 = vpack.c.b16 %v283, %v281
        %v342 = vpack.c.b16 %v286, %v284
        %v343 = vpack.c.b16 %v287, %v285
        %v344 = vpack.c.b16 %v290, %v288
        %v345 = vpack.c.b16 %v291, %v289
        %v346 = vpack.c.b16 %v294, %v292
        %v347 = vpack.c.b16 %v295, %v293
        %v348 = vpack.c.b16 %v298, %v296
        %v349 = vpack.c.b16 %v299, %v297
        %v350 = vpack.c.b16 %v302, %v300
        %v351 = vpack.c.b16 %v303, %v301
        %v352 = vpack.c.b16 %v306, %v304
        %v353 = vpack.c.b16 %v307, %v305
        %v354 = vpack.c.b16 %v310, %v308
        %v355 = vpack.c.b16 %v311, %v309
        %v356 = vpack.c.b16 %v314, %v312
        %v357 = vpack.c.b16 %v315, %v313
        %v358 = vpack.c.b16 %v318, %v316
        %v359 = vpack.c.b16 %v319, %v317
        %v360 = vpack.c.b16 %v322, %v320
        %v361 = vpack.c.b16 %v323, %v321
        %v362 = vpack.c.b16 %v326, %v324
        %v363 = vpack.c.b16 %v327, %v325
        %v364 = vpack.c.b16 %v330, %v328
        %v365 = vpack.c.b16 %v331, %v329
        %v366 = vpack.c.b16 %v334, %v332
        %v367 = vpack.c.b16 %v335, %v333
        %400 = vmatpush.bf16.msra.mxu0 %v350
        %401 = vmatpush.bf16.msra.mxu0 %v348
        %402 = vmatpush.bf16.msra.mxu0 %v346
        %403 = vmatpush.bf16.msra.mxu0 %v344
        %404 = vmatpush.bf16.msra.mxu0 %v342
        %405 = vmatpush.bf16.msra.mxu0 %v340
        %406 = vmatpush.bf16.msra.mxu0 %v338
        %407 = vmatpush.bf16.msra.mxu0 %v336
        %408 = vmatmul.bf16.gmra.mxu0 %v232
        %v409 = vpop.f32.mrf.mxu0
        %v410 = vadd.f32 0.0, %v409
        %v411 = vpop.f32.mrf.mxu0
        %v412 = vadd.f32 0.0, %v411
        %413 = vmatmul.bf16.gmra.mxu0 %v234
        %v414 = vpop.f32.mrf.mxu0
        %v415 = vadd.f32 0.0, %v414
        %v416 = vpop.f32.mrf.mxu0
        %v417 = vadd.f32 0.0, %v416
        %418 = vmatmul.bf16.gmra.mxu0 %v236
        %v419 = vpop.f32.mrf.mxu0
        %v420 = vadd.f32 0.0, %v419
        %v421 = vpop.f32.mrf.mxu0
        %v422 = vadd.f32 0.0, %v421
        %423 = vmatmul.bf16.gmra.mxu0 %v238
        %v424 = vpop.f32.mrf.mxu0
        %v425 = vadd.f32 0.0, %v424
        %v426 = vpop.f32.mrf.mxu0
        %v427 = vadd.f32 0.0, %v426
        %428 = vdwg.mxu0
        %429 = vmatpush.bf16.msra.mxu0 %v366
        %430 = vmatpush.bf16.msra.mxu0 %v364
        %431 = vmatpush.bf16.msra.mxu0 %v362
        %432 = vmatpush.bf16.msra.mxu0 %v360
        %433 = vmatpush.bf16.msra.mxu0 %v358
        %434 = vmatpush.bf16.msra.mxu0 %v356
        %435 = vmatpush.bf16.msra.mxu0 %v354
        %436 = vmatpush.bf16.msra.mxu0 %v352
        %437 = vmatmul.bf16.gmra.mxu0 %v233
        %v438 = vpop.f32.mrf.mxu0
        %v439 = vadd.f32 %v410, %v438
        %v440 = vpop.f32.mrf.mxu0
        %v441 = vadd.f32 %v412, %v440
        %442 = vmatmul.bf16.gmra.mxu0 %v235
        %v443 = vpop.f32.mrf.mxu0
        %v444 = vadd.f32 %v415, %v443
        %v445 = vpop.f32.mrf.mxu0
        %v446 = vadd.f32 %v417, %v445
        %447 = vmatmul.bf16.gmra.mxu0 %v237
        %v448 = vpop.f32.mrf.mxu0
        %v449 = vadd.f32 %v420, %v448
        %v450 = vpop.f32.mrf.mxu0
        %v451 = vadd.f32 %v422, %v450
        %452 = vmatmul.bf16.gmra.mxu0 %v239
        %v453 = vpop.f32.mrf.mxu0
        %v454 = vadd.f32 %v425, %v453
        %v455 = vpop.f32.mrf.mxu0
        %v456 = vadd.f32 %v427, %v455
        %457 = vdwg.mxu0
        %458 = vmatpush.bf16.msra.mxu0 %v351
        %459 = vmatpush.bf16.msra.mxu0 %v349
        %460 = vmatpush.bf16.msra.mxu0 %v347
        %461 = vmatpush.bf16.msra.mxu0 %v345
        %462 = vmatpush.bf16.msra.mxu0 %v343
        %463 = vmatpush.bf16.msra.mxu0 %v341
        %464 = vmatpush.bf16.msra.mxu0 %v339
        %465 = vmatpush.bf16.msra.mxu0 %v337
        %466 = vmatmul.bf16.gmra.mxu0 %v232
        %v467 = vpop.f32.mrf.mxu0
        %v468 = vadd.f32 0.0, %v467
        %v469 = vpop.f32.mrf.mxu0
        %v470 = vadd.f32 0.0, %v469
        %471 = vmatmul.bf16.gmra.mxu0 %v234
        %v472 = vpop.f32.mrf.mxu0
        %v473 = vadd.f32 0.0, %v472
        %v474 = vpop.f32.mrf.mxu0
        %v475 = vadd.f32 0.0, %v474
        %476 = vmatmul.bf16.gmra.mxu0 %v236
        %v477 = vpop.f32.mrf.mxu0
        %v478 = vadd.f32 0.0, %v477
        %v479 = vpop.f32.mrf.mxu0
        %v480 = vadd.f32 0.0, %v479
        %481 = vmatmul.bf16.gmra.mxu0 %v238
        %v482 = vpop.f32.mrf.mxu0
        %v483 = vadd.f32 0.0, %v482
        %v484 = vpop.f32.mrf.mxu0
        %v485 = vadd.f32 0.0, %v484
        %486 = vdwg.mxu0
        %487 = vmatpush.bf16.msra.mxu0 %v367
        %488 = vmatpush.bf16.msra.mxu0 %v365
        %489 = vmatpush.bf16.msra.mxu0 %v363
        %490 = vmatpush.bf16.msra.mxu0 %v361
        %491 = vmatpush.bf16.msra.mxu0 %v359
        %492 = vmatpush.bf16.msra.mxu0 %v357
        %493 = vmatpush.bf16.msra.mxu0 %v355
        %494 = vmatpush.bf16.msra.mxu0 %v353
        %495 = vmatmul.bf16.gmra.mxu0 %v233
        %v496 = vpop.f32.mrf.mxu0
        %v497 = vadd.f32 %v468, %v496
        %v498 = vpop.f32.mrf.mxu0
        %v499 = vadd.f32 %v470, %v498
        %500 = vmatmul.bf16.gmra.mxu0 %v235
        %v501 = vpop.f32.mrf.mxu0
        %v502 = vadd.f32 %v473, %v501
        %v503 = vpop.f32.mrf.mxu0
        %v504 = vadd.f32 %v475, %v503
        %505 = vmatmul.bf16.gmra.mxu0 %v237
        %v506 = vpop.f32.mrf.mxu0
        %v507 = vadd.f32 %v478, %v506
        %v508 = vpop.f32.mrf.mxu0
        %v509 = vadd.f32 %v480, %v508
        %510 = vmatmul.bf16.gmra.mxu0 %v239
        %v511 = vpop.f32.mrf.mxu0
        %v512 = vadd.f32 %v483, %v511
        %v513 = vpop.f32.mrf.mxu0
        %v514 = vadd.f32 %v485, %v513
        %515 = vdwg.mxu0
        %v516 = vsub.f32 %v184, %v439
        %v517 = vsub.f32 %v185, %v497
        %v518 = vsub.f32 %v186, %v441
        %v519 = vsub.f32 %v187, %v499
        %v520 = vsub.f32 %v188, %v444
        %v521 = vsub.f32 %v189, %v502
        %v522 = vsub.f32 %v190, %v446
        %v523 = vsub.f32 %v191, %v504
        %v524 = vsub.f32 %v192, %v449
        %v525 = vsub.f32 %v193, %v507
        %v526 = vsub.f32 %v194, %v451
        %v527 = vsub.f32 %v195, %v509
        %v528 = vsub.f32 %v196, %v454
        %v529 = vsub.f32 %v197, %v512
        %v530 = vsub.f32 %v198, %v456
        %v531 = vsub.f32 %v199, %v514
        %v532 = vand.u32 2147483647, %v516
        %v533 = vand.u32 2147483647, %v517
        %v534 = vand.u32 2147483647, %v518
        %v535 = vand.u32 2147483647, %v519
        %v536 = vand.u32 2147483647, %v520
        %v537 = vand.u32 2147483647, %v521
        %v538 = vand.u32 2147483647, %v522
        %v539 = vand.u32 2147483647, %v523
        %v540 = vand.u32 2147483647, %v524
        %v541 = vand.u32 2147483647, %v525
        %v542 = vand.u32 2147483647, %v526
        %v543 = vand.u32 2147483647, %v527
        %v544 = vand.u32 2147483647, %v528
        %v545 = vand.u32 2147483647, %v529
        %v546 = vand.u32 2147483647, %v530
        %v547 = vand.u32 2147483647, %v531
        %v548 = vpack.c.bf16 %v534, %v532
        %v549 = vpack.c.bf16 %v535, %v533
        %v550 = vpack.c.bf16 %v538, %v536
        %v551 = vpack.c.bf16 %v539, %v537
        %v552 = vpack.c.bf16 %v542, %v540
        %v553 = vpack.c.bf16 %v543, %v541
        %v554 = vpack.c.bf16 %v546, %v544
        %v555 = vpack.c.bf16 %v547, %v545
        %556 = vmatpush.bf16.msra.mxu0 %v350
        %557 = vmatpush.bf16.msra.mxu0 %v348
        %558 = vmatpush.bf16.msra.mxu0 %v346
        %559 = vmatpush.bf16.msra.mxu0 %v344
        %560 = vmatpush.bf16.msra.mxu0 %v342
        %561 = vmatpush.bf16.msra.mxu0 %v340
        %562 = vmatpush.bf16.msra.mxu0 %v338
        %563 = vmatpush.bf16.msra.mxu0 %v336
        %564 = vmatmul.bf16.gmra.mxu0 %v548
        %v565 = vpop.f32.mrf.mxu0
        %v566 = vadd.f32 0.0, %v565
        %v567 = vpop.f32.mrf.mxu0
        %v568 = vadd.f32 0.0, %v567
        %569 = vmatmul.bf16.gmra.mxu0 %v550
        %v570 = vpop.f32.mrf.mxu0
        %v571 = vadd.f32 0.0, %v570
        %v572 = vpop.f32.mrf.mxu0
        %v573 = vadd.f32 0.0, %v572
        %574 = vmatmul.bf16.gmra.mxu0 %v552
        %v575 = vpop.f32.mrf.mxu0
        %v576 = vadd.f32 0.0, %v575
        %v577 = vpop.f32.mrf.mxu0
        %v578 = vadd.f32 0.0, %v577
        %579 = vmatmul.bf16.gmra.mxu0 %v554
        %v580 = vpop.f32.mrf.mxu0
        %v581 = vadd.f32 0.0, %v580
        %v582 = vpop.f32.mrf.mxu0
        %v583 = vadd.f32 0.0, %v582
        %584 = vdwg.mxu0
        %585 = vmatpush.bf16.msra.mxu0 %v366
        %586 = vmatpush.bf16.msra.mxu0 %v364
        %587 = vmatpush.bf16.msra.mxu0 %v362
        %588 = vmatpush.bf16.msra.mxu0 %v360
        %589 = vmatpush.bf16.msra.mxu0 %v358
        %590 = vmatpush.bf16.msra.mxu0 %v356
        %591 = vmatpush.bf16.msra.mxu0 %v354
        %592 = vmatpush.bf16.msra.mxu0 %v352
        %593 = vmatmul.bf16.gmra.mxu0 %v549
        %v594 = vpop.f32.mrf.mxu0
        %v595 = vadd.f32 %v566, %v594
        %v596 = vpop.f32.mrf.mxu0
        %v597 = vadd.f32 %v568, %v596
        %598 = vmatmul.bf16.gmra.mxu0 %v551
        %v599 = vpop.f32.mrf.mxu0
        %v600 = vadd.f32 %v571, %v599
        %v601 = vpop.f32.mrf.mxu0
        %v602 = vadd.f32 %v573, %v601
        %603 = vmatmul.bf16.gmra.mxu0 %v553
        %v604 = vpop.f32.mrf.mxu0
        %v605 = vadd.f32 %v576, %v604
        %v606 = vpop.f32.mrf.mxu0
        %v607 = vadd.f32 %v578, %v606
        %608 = vmatmul.bf16.gmra.mxu0 %v555
        %v609 = vpop.f32.mrf.mxu0
        %v610 = vadd.f32 %v581, %v609
        %v611 = vpop.f32.mrf.mxu0
        %v612 = vadd.f32 %v583, %v611
        %613 = vdwg.mxu0
        %614 = vmatpush.bf16.msra.mxu0 %v351
        %615 = vmatpush.bf16.msra.mxu0 %v349
        %616 = vmatpush.bf16.msra.mxu0 %v347
        %617 = vmatpush.bf16.msra.mxu0 %v345
        %618 = vmatpush.bf16.msra.mxu0 %v343
        %619 = vmatpush.bf16.msra.mxu0 %v341
        %620 = vmatpush.bf16.msra.mxu0 %v339
        %621 = vmatpush.bf16.msra.mxu0 %v337
        %622 = vmatmul.bf16.gmra.mxu0 %v548
        %v623 = vpop.f32.mrf.mxu0
        %v624 = vadd.f32 0.0, %v623
        %v625 = vpop.f32.mrf.mxu0
        %v626 = vadd.f32 0.0, %v625
        %627 = vmatmul.bf16.gmra.mxu0 %v550
        %v628 = vpop.f32.mrf.mxu0
        %v629 = vadd.f32 0.0, %v628
        %v630 = vpop.f32.mrf.mxu0
        %v631 = vadd.f32 0.0, %v630
        %632 = vmatmul.bf16.gmra.mxu0 %v552
        %v633 = vpop.f32.mrf.mxu0
        %v634 = vadd.f32 0.0, %v633
        %v635 = vpop.f32.mrf.mxu0
        %v636 = vadd.f32 0.0, %v635
        %637 = vmatmul.bf16.gmra.mxu0 %v554
        %v638 = vpop.f32.mrf.mxu0
        %v639 = vadd.f32 0.0, %v638
        %v640 = vpop.f32.mrf.mxu0
        %v641 = vadd.f32 0.0, %v640
        %642 = vdwg.mxu0
        %643 = vmatpush.bf16.msra.mxu0 %v367
        %644 = vmatpush.bf16.msra.mxu0 %v365
        %645 = vmatpush.bf16.msra.mxu0 %v363
        %646 = vmatpush.bf16.msra.mxu0 %v361
        %647 = vmatpush.bf16.msra.mxu0 %v359
        %648 = vmatpush.bf16.msra.mxu0 %v357
        %649 = vmatpush.bf16.msra.mxu0 %v355
        %650 = vmatpush.bf16.msra.mxu0 %v353
        %651 = vmatmul.bf16.gmra.mxu0 %v549
        %v652 = vpop.f32.mrf.mxu0
        %v653 = vadd.f32 %v624, %v652
        %v654 = vpop.f32.mrf.mxu0
        %v655 = vadd.f32 %v626, %v654
        %656 = vmatmul.bf16.gmra.mxu0 %v551
        %v657 = vpop.f32.mrf.mxu0
        %v658 = vadd.f32 %v629, %v657
        %v659 = vpop.f32.mrf.mxu0
        %v660 = vadd.f32 %v631, %v659
        %661 = vmatmul.bf16.gmra.mxu0 %v553
        %v662 = vpop.f32.mrf.mxu0
        %v663 = vadd.f32 %v634, %v662
        %v664 = vpop.f32.mrf.mxu0
        %v665 = vadd.f32 %v636, %v664
        %666 = vmatmul.bf16.gmra.mxu0 %v555
        %v667 = vpop.f32.mrf.mxu0
        %v668 = vadd.f32 %v639, %v667
        %v669 = vpop.f32.mrf.mxu0
        %v670 = vadd.f32 %v641, %v669
        %671 = vdwg.mxu0
        %vm672 = vcmp.lt.f32.partialorder %v595, 1e-12
        %vm673 = vcmp.lt.f32.partialorder %v653, 1e-12
        %vm674 = vcmp.lt.f32.partialorder %v597, 1e-12
        %vm675 = vcmp.lt.f32.partialorder %v655, 1e-12
        %vm676 = vcmp.lt.f32.partialorder %v600, 1e-12
        %vm677 = vcmp.lt.f32.partialorder %v658, 1e-12
        %vm678 = vcmp.lt.f32.partialorder %v602, 1e-12
        %vm679 = vcmp.lt.f32.partialorder %v660, 1e-12
        %vm680 = vcmp.lt.f32.partialorder %v605, 1e-12
        %vm681 = vcmp.lt.f32.partialorder %v663, 1e-12
        %vm682 = vcmp.lt.f32.partialorder %v607, 1e-12
        %vm683 = vcmp.lt.f32.partialorder %v665, 1e-12
        %vm684 = vcmp.lt.f32.partialorder %v610, 1e-12
        %vm685 = vcmp.lt.f32.partialorder %v668, 1e-12
        %vm686 = vcmp.lt.f32.partialorder %v612, 1e-12
        %vm687 = vcmp.lt.f32.partialorder %v670, 1e-12
        %v688 = vsel %vm672, 1.0, %v595
        %v689 = vsel %vm673, 1.0, %v653
        %v690 = vsel %vm674, 1.0, %v597
        %v691 = vsel %vm675, 1.0, %v655
        %v692 = vsel %vm676, 1.0, %v600
        %v693 = vsel %vm677, 1.0, %v658
        %v694 = vsel %vm678, 1.0, %v602
        %v695 = vsel %vm679, 1.0, %v660
        %v696 = vsel %vm680, 1.0, %v605
        %v697 = vsel %vm681, 1.0, %v663
        %v698 = vsel %vm682, 1.0, %v607
        %v699 = vsel %vm683, 1.0, %v665
        %v700 = vsel %vm684, 1.0, %v610
        %v701 = vsel %vm685, 1.0, %v668
        %v702 = vsel %vm686, 1.0, %v612
        %v703 = vsel %vm687, 1.0, %v670
        %v704 = vrcp.pop %v688
        %v705 = vrcp.pop %v689
        %v706 = vrcp.pop %v690
        %v707 = vrcp.pop %v691
        %v708 = vrcp.pop %v692
        %v709 = vrcp.pop %v693
        %v710 = vrcp.pop %v694
        %v711 = vrcp.pop %v695
        %v712 = vrcp.pop %v696
        %v713 = vrcp.pop %v697
        %v714 = vrcp.pop %v698
        %v715 = vrcp.pop %v699
        %v716 = vrcp.pop %v700
        %v717 = vrcp.pop %v701
        %v718 = vrcp.pop %v702
        %v719 = vrcp.pop %v703
        %v720 = vmul.f32 %v516, %v704
        %v721 = vmul.f32 %v517, %v705
        %v722 = vmul.f32 %v518, %v706
        %v723 = vmul.f32 %v519, %v707
        %v724 = vmul.f32 %v520, %v708
        %v725 = vmul.f32 %v521, %v709
        %v726 = vmul.f32 %v522, %v710
        %v727 = vmul.f32 %v523, %v711
        %v728 = vmul.f32 %v524, %v712
        %v729 = vmul.f32 %v525, %v713
        %v730 = vmul.f32 %v526, %v714
        %v731 = vmul.f32 %v527, %v715
        %v732 = vmul.f32 %v528, %v716
        %v733 = vmul.f32 %v529, %v717
        %v734 = vmul.f32 %v530, %v718
        %v735 = vmul.f32 %v531, %v719
        %736 = vst [vmem:[%s181] sm:$0xff] %v720
        %737 = vst [vmem:[%s181 + $0x8] sm:$0xff] %v721
        %738 = vst [vmem:[%s181 + $0x10] sm:$0xff] %v722
        %739 = vst [vmem:[%s181 + $0x18] sm:$0xff] %v723
        %740 = vst [vmem:[%s181 + $0x20] sm:$0xff] %v724
        %741 = vst [vmem:[%s181 + $0x28] sm:$0xff] %v725
        %742 = vst [vmem:[%s181 + $0x30] sm:$0xff] %v726
        %743 = vst [vmem:[%s181 + $0x38] sm:$0xff] %v727
        %744 = vst [vmem:[%s181 + $0x40] sm:$0xff] %v728
        %745 = vst [vmem:[%s181 + $0x48] sm:$0xff] %v729
        %746 = vst [vmem:[%s181 + $0x50] sm:$0xff] %v730
        %747 = vst [vmem:[%s181 + $0x58] sm:$0xff] %v731
        %748 = vst [vmem:[%s181 + $0x60] sm:$0xff] %v732
        %749 = vst [vmem:[%s181 + $0x68] sm:$0xff] %v733
        %750 = vst [vmem:[%s181 + $0x70] sm:$0xff] %v734
        %751 = vst [vmem:[%s181 + $0x78] sm:$0xff] %v735
        %s752 = sand.u32 %s75, 1
        %s753 = scalar_lea.sflag [#allocation4], %s752
        %s754 = sand.u32 %s75, 1
        %s755 = smul.addr %s754, 128
        %s756 = scalar_lea.vmem [#allocation7], %s755
        // Predicated region
        $region37: #{tpu_custom_call.1} parent=27 // pred_check
          %p757 = pneg %p85
        $region38: #{tpu_custom_call.1} parent=27 // pred_check_branch
          %759 = sbr.rel (%p757) target = $region40
        $region39: #{tpu_custom_call.1} parent=27 // pred_region
          %s760 = smul.u32 8, %s20
          %762 = vsyncadd %s753, 0
          %s763 = smul.addr %s760, 2
          %s764 = smul.addr %s763, 8
          %s765 = scalar_lea.hbm %s2, %s764
          %s766 = sshll.u32 %s756, 4
          %s767 = int_to_ptr.vmem [resolvable:$true] %s766
          %s768 = sshll.u32 %s765, 4
          %s769 = int_to_ptr.hbm [resolvable:$true] %s768
          %774 = dma.vmem_to_hbm [thread:$0]  %s767, 2048, %s769, %s753, 256, 256, 16
        $region40: #{tpu_custom_call.1} parent=27 // pred_fallthru
          _
      $region28: #{tpu_custom_call.1} parent=5 // pred_fallthru
        _
      %p775 = scmp.le.s32.totalorder 2, %s15
      // Predicated region
      $region41: #{tpu_custom_call.1} parent=5 // pred_check
        %p776 = pneg %p775
      $region42: #{tpu_custom_call.1} parent=5 // pred_check_branch
        %778 = sbr.rel (%p776) target = $region44
      $region43: #{tpu_custom_call.1} parent=5 // pred_region
        %s779 = ssub.s32 %s15, 2
        // Predicated region
        $region45: #{tpu_custom_call.1} parent=43 // pred_check
          %p780 = pneg %p91
        $region46: #{tpu_custom_call.1} parent=43 // pred_check_branch
          %782 = sbr.rel (%p780) target = $region48
        $region47: #{tpu_custom_call.1} parent=43 // pred_region
          %s783 = sand.u32 %s76, 1
          %s784 = scalar_lea.sflag [#allocation4], %s783
          %s785 = sand.u32 %s76, 1
          %s786 = smul.addr %s785, 128
          %s787 = scalar_lea.vmem [#allocation7], %s786
          %789 = dma.done %s784, 2048
        $region48: #{tpu_custom_call.1} parent=43 // pred_fallthru
          _
      $region44: #{tpu_custom_call.1} parent=5 // pred_fallthru
        _
    $region6: #{tpu_custom_call.1} parent=1 // loop_footer
      %s19 = sadd.s32 1, %s15
    $region7: #{tpu_custom_call.1} parent=1 // loop_footer_branch
      %14 = sbr.rel target = $region3
    $region8: #{tpu_custom_call.1} parent=1 // loop_exit
      _
    %790 = vsyncpa [#allocation3], 1
    %s791 = scalar_lea.sflag [#allocation3], 1
    %792 = vsyncpa %s791, 1
    %793 = vsyncpa [#allocation6], 1
    %794 = vsyncpa [#allocation4], 1
    %s795 = scalar_lea.sflag [#allocation4], 1
    %796 = vsyncpa %s795, 1

</llo_original>
